<compile_context>
chip_gen: v6e
topology: v6e:2x2x1
jax: 0.10.0
libtpu: 0.0.40
codegen_flags: <defaults>
</compile_context>

<pallas_src>
import math

import jax
import jax.numpy as jnp
from jax.experimental import pallas as pl
from jax.experimental.pallas import tpu as pltpu


_TILE_BYTES_FLAT = 8 * 1024 * 1024   # per-buffer target, flat path (2x + 2y + 1pe ~ 40 MiB)
_TILE_BYTES_3D = 6 * 1024 * 1024     # per-buffer target, fallback path (3 double-buffered arrays)
_MAX_LANE_WIDTH = 1024               # cap on the folded lane width


def _vmem_limit_bytes() -> int:
    """Scoped-VMEM limit: 3/4 of physical capacity, capped at 96 MiB, floor 48 MiB."""
    try:
        cap = int(pltpu.get_tpu_info().vmem_capacity_bytes)
    except Exception:
        cap = 64 * 1024 * 1024  # v7x-safe assumption if the query is unavailable
    return max(48 * 1024 * 1024, min(96 * 1024 * 1024, (cap * 3) // 4))


def _build_pe_matrix(seq_len: int, d_model: int) -> jnp.ndarray:
    """Deterministic parameter setup (plain JAX glue): (1, seq_len, d_model) f32.

    Replicates the PyTorch double loop exactly, including the raw channel
    index i in the exponent for both the sin (even i) and cos (odd i) branches.
    """
    pos = jnp.arange(seq_len, dtype=jnp.float32)[:, None]            # (S, 1)
    i = jnp.arange(d_model, dtype=jnp.float32)[None, :]              # (1, D)
    angle = pos / jnp.power(10000.0, 2.0 * i / float(d_model))       # (S, D)
    pe = jnp.where((jnp.arange(d_model)[None, :] % 2) == 0,
                   jnp.sin(angle), jnp.cos(angle))
    return pe[None, :, :].astype(jnp.float32)                        # (1, S, D)


def _choose_cols(seq_len: int, d_model: int, cap: int = _MAX_LANE_WIDTH) -> int:
    """Largest multiple of 128 (<= cap) that divides S*D; 0 if none exists."""
    sd = seq_len * d_model
    best = 0
    c = 128
    while c <= min(cap, sd):
        if sd % c == 0:
            best = c
        c += 128
    return best


def _scale_add_kernel(scale: float):
    def kernel(x_ref, pe_ref, o_ref):
        # Mem-bound hot path: upcast to f32 (v5e has no bf16 VALU), scale, add pe.
        x = x_ref[...].astype(jnp.float32)
        p = pe_ref[...].astype(jnp.float32)
        o_ref[...] = (x * scale + p).astype(o_ref.dtype)
    return kernel


def positional_encoder(inputs: jnp.ndarray, pe_matrix: jnp.ndarray) -> jnp.ndarray:
    """inputs: (B, S, D); pe_matrix: (1, S, D) f32 -> (B, S, D), dtype of inputs."""
    B, S, D = inputs.shape
    scale = math.sqrt(float(D))
    N = B * S * D
    itemsize = jnp.dtype(inputs.dtype).itemsize
    vmem_limit = _vmem_limit_bytes()
    # pe lives in the input dtype for sub-32-bit inputs (halves its VMEM footprint
    # and one-time DMA); kept f32 for f32 inputs so numerics are exact there.
    pe_dtype = inputs.dtype if itemsize < 4 else jnp.float32
    kernel = _scale_add_kernel(scale)

    sd = S * D
    C = _choose_cols(S, D)
    if C == 0 and sd * itemsize <= _TILE_BYTES_FLAT:
        # No lane-dense divisor, but a full-width row is small enough: a block
        # dim equal to the full array dim is always legal (and far denser than D).
        C = sd

    use_flat = False
    if C:
        P = sd // C                          # pe row-period in the (R, C) view
        R = N // C
        L = (P * 8) // math.gcd(P, 8)        # lcm(P, 8): pe-period + sublane aligned
        min_rows = min(L, R)                 # smallest legal row tile for this layout
        # Guard: never inflate the tile past ~2x the target just to stay
        # period-aligned (e.g. D=128 with S an odd prime would need ~40 MiB).
        use_flat = min_rows * C * itemsize <= 2 * _TILE_BYTES_FLAT

    if use_flat:
        rows_target = max(1, _TILE_BYTES_FLAT // (C * itemsize))
        TM = (rows_target // L) * L
        if TM == 0:
            TM = L
        TM = min(TM, R)
        num_tiles = -(-R // TM)
        # v7x megacore: make sure the "parallel" grid has >= 2 steps when R allows
        # a period-aligned split, so both TensorCores get work.
        if num_tiles < 2 and R >= 2 * L:
            TM = ((R // 2) // L) * L
            num_tiles = -(-R // TM)

        # Resident pe block: one row-tile's worth of the periodic pe pattern,
        # in pe_dtype. Constant index_map + Buffered(1) -> DMA'd once, single
        # VMEM buffer, reused by every grid step.
        pe_block = jnp.tile(pe_matrix.reshape(P, C), (TM // P, 1)).astype(pe_dtype)
        x2 = inputs.reshape(R, C)   # free, row-major metadata reshape

        out2 = pl.pallas_call(
            kernel,
            out_shape=jax.ShapeDtypeStruct((R, C), inputs.dtype),
            grid_spec=pltpu.PrefetchScalarGridSpec(
                num_scalar_prefetch=0,
                grid=(num_tiles,),
                in_specs=[
                    pl.BlockSpec((TM, C), lambda t: (t, 0)),      # streamed input rows
                    pl.BlockSpec((TM, C), lambda t: (0, 0),       # resident pe tile
                                 pipeline_mode=pl.Buffered(1)),
                ],
                out_specs=pl.BlockSpec((TM, C), lambda t: (t, 0)),
            ),
            compiler_params=pltpu.CompilerParams(
                dimension_semantics=("parallel",),
                vmem_limit_bytes=vmem_limit,
            ),
            cost_estimate=pl.CostEstimate(
                flops=2 * N,
                transcendentals=0,
                bytes_accessed=2 * N * itemsize
                + TM * C * jnp.dtype(pe_dtype).itemsize,
            ),
        )(x2, pe_block)
        return out2.reshape(B, S, D)

    # ---- Fallback path: keep the (B, S, D) layout and stream matching pe S-tiles.
    # Lane width is D here; if D is not a multiple of 128 stores are masked but
    # correct (padding D to the next multiple of 128 would remove the masking).
    rows_target = max(8, ((_TILE_BYTES_3D // max(1, D * itemsize)) // 8) * 8)
    TS = S if S <= rows_target else rows_target
    num_s_tiles = -(-S // TS)
    pe3 = pe_matrix.astype(pe_dtype)   # (1, S, D)

    out = pl.pallas_call(
        kernel,
        out_shape=jax.ShapeDtypeStruct((B, S, D), inputs.dtype),
        grid_spec=pltpu.PrefetchScalarGridSpec(
            num_scalar_prefetch=0,
            grid=(B, num_s_tiles),
            in_specs=[
                pl.BlockSpec((1, TS, D), lambda b, s: (b, s, 0)),   # streamed input
                pl.BlockSpec((1, TS, D), lambda b, s: (0, s, 0)),   # streamed pe S-tile
            ],
            out_specs=pl.BlockSpec((1, TS, D), lambda b, s: (b, s, 0)),
        ),
        compiler_params=pltpu.CompilerParams(
            dimension_semantics=("parallel", "parallel"),
            vmem_limit_bytes=vmem_limit,
        ),
        cost_estimate=pl.CostEstimate(
            flops=2 * N,
            transcendentals=0,
            bytes_accessed=2 * N * itemsize + S * D * jnp.dtype(pe_dtype).itemsize,
        ),
    )(inputs, pe3)
    return out


if __name__ == "__main__":
    def _run_and_check(batch, seq_len, d_model, key, dtype=jnp.float32, tol=1e-5):
        x = jax.random.normal(key, (batch, seq_len, d_model),
                              dtype=jnp.float32).astype(dtype)
        pe = _build_pe_matrix(seq_len, d_model)
        out = jax.block_until_ready(positional_encoder(x, pe))
        # Reference check against plain JAX semantics of the module's forward.
        ref = (x.astype(jnp.float32) * jnp.sqrt(jnp.float32(d_model)) + pe).astype(dtype)
        assert out.shape == (batch, seq_len, d_model)
        assert out.dtype == jnp.dtype(dtype)
        assert jnp.allclose(out.astype(jnp.float32), ref.astype(jnp.float32),
                            atol=tol, rtol=tol)

    key = jax.random.PRNGKey(0)
    k1, k2, k3, k4 = jax.random.split(key, 4)

    # Small config matching the module's intended use (single-tile flat path).
    _run_and_check(2, 8, 32, k1)
    # Moderate config exercising the multi-tile (2-way "parallel") flat path.
    _run_and_check(16, 256, 512, k2)
    # bf16 inputs: resident pe kept in bf16; compute still f32 inside the kernel.
    _run_and_check(8, 128, 256, k3, dtype=jnp.bfloat16, tol=2e-2)
    # Shape whose pe period defeats lcm(P, 8) alignment -> streamed-pe fallback path.
    _run_and_check(4, 10007, 128, k4)

    print("KERNEL_OK")
</pallas_src>

<mosaic_0001>
module attributes {stable_mosaic.version = 11 : i64} {
  func.func @kernel(%arg0: i32, %arg1: memref<2x256xf32, #tpu.memory_space<vmem>>, %arg2: memref<2x256xf32, #tpu.memory_space<vmem>>, %arg3: memref<2x256xf32, #tpu.memory_space<vmem>>) attributes {dimension_semantics = [#tpu.dimension_semantics<parallel>], iteration_bounds = array<i64: 1>, scalar_prefetch = 0 : i64, scratch_operands = 0 : i64, tpu.core_type = #tpu.core_type<tc>, window_params = [{transform_indices = @transform_0, window_bounds = array<i64: 2, 256>}, {pipeline_mode = #tpu.pipeline_mode<synchronous>, transform_indices = @transform_1, window_bounds = array<i64: 2, 256>}, {transform_indices = @transform_2, window_bounds = array<i64: 2, 256>}]} {
    %c0 = arith.constant 0 : index
    %c0_0 = arith.constant 0 : index
    %0 = vector.load %arg1[%c0, %c0_0] : memref<2x256xf32, #tpu.memory_space<vmem>>, vector<2x256xf32>
    %c0_1 = arith.constant 0 : index
    %c0_2 = arith.constant 0 : index
    %1 = vector.load %arg2[%c0_1, %c0_2] : memref<2x256xf32, #tpu.memory_space<vmem>>, vector<2x256xf32>
    %cst = arith.constant 5.65685415 : f32
    %2 = vector.broadcast %cst : f32 to vector<2x256xf32>
    %3 = arith.mulf %0, %2 : vector<2x256xf32>
    %4 = arith.addf %3, %1 : vector<2x256xf32>
    %c0_3 = arith.constant 0 : index
    %c0_4 = arith.constant 0 : index
    %5 = vector.load %arg3[%c0_3, %c0_4] : memref<2x256xf32, #tpu.memory_space<vmem>>, vector<2x256xf32>
    tpu.vector_store %arg3[%c0_3, %c0_4], %4 {strides = array<i32>} : memref<2x256xf32, #tpu.memory_space<vmem>>, vector<2x256xf32>,
    return
  }
  func.func @transform_0(%arg0: i32) -> (i32, i32) {
    %c0_i32 = arith.constant 0 : i32
    %c0_i32_0 = arith.constant 0 : i32
    return %arg0, %c0_i32 : i32, i32
  }
  func.func @transform_1(%arg0: i32) -> (i32, i32) {
    %c0_i32 = arith.constant 0 : i32
    %c0_i32_0 = arith.constant 0 : i32
    %c0_i32_1 = arith.constant 0 : i32
    return %c0_i32, %c0_i32_0 : i32, i32
  }
  func.func @transform_2(%arg0: i32) -> (i32, i32) {
    %c0_i32 = arith.constant 0 : i32
    %c0_i32_0 = arith.constant 0 : i32
    return %arg0, %c0_i32 : i32, i32
  }
}

</mosaic_0001>

<llo_original>
// kernel: tpu_custom_call.1
$region0: #{tpu_custom_call.1}
  #allocation0 [shape = 'u32[]', space=smem, size = 0x4, offset = 0x4, fixed_abs, tag = 'smem constant byte address 0x4 - core index']
  #allocation1 [shape = 'u32[144,128]{1,0:T(1,128)}', space=vmem, size = 0x12000, scoped, tag = 'internal scratch']
  %s0 = inlined_call_operand.hbm [shape: f32[2,256], index: 0, kind: input, shape index: {}]
  %s1 = inlined_call_operand.hbm [shape: f32[2,256], index: 1, kind: input, shape index: {}]
  %s2 = inlined_call_operand.hbm [shape: f32[2,256], index: 2, kind: output, shape index: {}]
  %s3 = sld [smem:[#allocation0]]
  $region26: #{tpu_custom_call.1} parent=0
    _
  %s5 = ssub.s32 1, %s3
  %s6 = scalar_select 0, %s5, %s3
  $region1: #{tpu_custom_call.1} parent=0
    #allocation2 [shape = 'u8[2048]{0}', space=vmem, size = 0x800, scoped, tag = 'input window, operand 0, single buffered']
    #allocation3 [shape = 's32[1]{0}', space=sflag, size = 0x4, scoped, tag = 'scoped memory for tpu_custom_call.1']
    #allocation4 [shape = 's32[1]{0}', space=sflag, size = 0x4, scoped, tag = 'scoped memory for tpu_custom_call.1']
    #allocation5 [shape = 'u8[2048]{0}', space=vmem, size = 0x800, scoped, tag = 'input window, operand 1, single buffered']
    #allocation6 [shape = 's32[1]{0}', space=sflag, size = 0x4, scoped, tag = 'scoped memory for tpu_custom_call.1']
    #allocation7 [shape = 'u8[2048]{0}', space=vmem, size = 0x800, scoped, tag = 'output window, operand 0, single buffered']
    %7 = vsyncpa [#allocation3], 0
    %8 = vsyncpa [#allocation6], 0
    %9 = vsyncpa [#allocation4], 0
    // Predicated region
    $region2: #{tpu_custom_call.1} parent=1 // pred_check
      _
    $region3: #{tpu_custom_call.1} parent=1 // pred_check_branch
      %11 = sbr.rel (0) target = $region5
    $region4: #{tpu_custom_call.1} parent=1 // pred_region
      %s13 = ssub.s32 64, 64
      %14 = vsyncadd [#allocation3], %s13
      %s16 = sshll.u32 [#allocation2], 4
      %s17 = int_to_ptr.vmem [resolvable:$true] %s16
      %19 = dma.hbm_to_vmem [thread:$0]  %s0, 64, %s17, [#allocation3]
    $region5: #{tpu_custom_call.1} parent=1 // pred_fallthru
      _
    // Predicated region
    $region6: #{tpu_custom_call.1} parent=1 // pred_check
      _
    $region7: #{tpu_custom_call.1} parent=1 // pred_check_branch
      %21 = sbr.rel (0) target = $region9
    $region8: #{tpu_custom_call.1} parent=1 // pred_region
      %s23 = ssub.s32 64, 64
      %24 = vsyncadd [#allocation6], %s23
      %s26 = sshll.u32 [#allocation5], 4
      %s27 = int_to_ptr.vmem [resolvable:$true] %s26
      %29 = dma.hbm_to_vmem [thread:$0]  %s1, 64, %s27, [#allocation6]
    $region9: #{tpu_custom_call.1} parent=1 // pred_fallthru
      _
    // Predicated region
    $region10: #{tpu_custom_call.1} parent=1 // pred_check
      _
    $region11: #{tpu_custom_call.1} parent=1 // pred_check_branch
      %31 = sbr.rel (0) target = $region13
    $region12: #{tpu_custom_call.1} parent=1 // pred_region
      %32 = dma.done [#allocation3], 64
    $region13: #{tpu_custom_call.1} parent=1 // pred_fallthru
      _
    // Predicated region
    $region14: #{tpu_custom_call.1} parent=1 // pred_check
      _
    $region15: #{tpu_custom_call.1} parent=1 // pred_check_branch
      %34 = sbr.rel (0) target = $region17
    $region16: #{tpu_custom_call.1} parent=1 // pred_region
      %35 = dma.done [#allocation6], 64
    $region17: #{tpu_custom_call.1} parent=1 // pred_fallthru
      _
    %v36 = vld [vmem:[#allocation2] sm:$0xf]
    %v37 = vld [vmem:[#allocation5] sm:$0xf]
    %v38 = vmul.f32 %v36, 5.656854
    %v39 = vadd.f32 %v38, %v37
    %40 = vst [vmem:[#allocation7] sm:$0xf] %v39
    // Predicated region
    $region18: #{tpu_custom_call.1} parent=1 // pred_check
      _
    $region19: #{tpu_custom_call.1} parent=1 // pred_check_branch
      %42 = sbr.rel (0) target = $region21
    $region20: #{tpu_custom_call.1} parent=1 // pred_region
      %s44 = ssub.s32 64, 64
      %45 = vsyncadd [#allocation4], %s44
      %s47 = sshll.u32 [#allocation7], 4
      %s48 = int_to_ptr.vmem [resolvable:$true] %s47
      %50 = dma.vmem_to_hbm [thread:$0]  %s48, 64, %s2, [#allocation4]
    $region21: #{tpu_custom_call.1} parent=1 // pred_fallthru
      _
    // Predicated region
    $region22: #{tpu_custom_call.1} parent=1 // pred_check
      _
    $region23: #{tpu_custom_call.1} parent=1 // pred_check_branch
      %52 = sbr.rel (0) target = $region25
    $region24: #{tpu_custom_call.1} parent=1 // pred_region
      %53 = dma.done [#allocation4], 64
    $region25: #{tpu_custom_call.1} parent=1 // pred_fallthru
      _
    %54 = vsyncpa [#allocation3], 1
    %55 = vsyncpa [#allocation6], 1
    %56 = vsyncpa [#allocation4], 1

</llo_original>
